<compile_context>
chip_gen: v7x
topology: tpu7x:2x2x1
jax: 0.10.0
libtpu: 0.0.40
codegen_flags: <defaults>
</compile_context>

<pallas_src>
import functools

import numpy as np

import jax
import jax.numpy as jnp
from jax import lax
from jax.experimental import pallas as pl
from jax.experimental.pallas import tpu as pltpu


def _dot01_2pass(lhs_f32, rhs01_bf16):
    """f32 LHS x exact-{0,1} bf16 RHS in 2 MXU passes (hi/lo bf16 split).

    Same accuracy as Precision.HIGH here (the RHS lo-part is zero) at 2/3 the
    vmatmul pushes and 3x fewer than Precision.HIGHEST.
    """
    hi = lhs_f32.astype(jnp.bfloat16)
    lo = (lhs_f32 - hi.astype(jnp.float32)).astype(jnp.bfloat16)
    out = jnp.dot(hi, rhs01_bf16, preferred_element_type=jnp.float32)
    return out + jnp.dot(lo, rhs01_bf16, preferred_element_type=jnp.float32)


def _flex_ln_kernel_folded(x_ref, s_ref, st_ref, o_ref, *, eps, d, inv_denom):
    """Lane-dense path: each (br, 128) tile holds g = 128//d rows per sublane."""
    x = x_ref[...].astype(jnp.float32)          # (br, 128)
    s = s_ref[...]                              # (128, g) bf16 0/1, resident
    st = st_ref[...]                            # (g, 128) bf16 0/1, resident

    seg_sum = _dot01_2pass(x, s)                # (br, g)  per-segment sum
    mean = seg_sum * (1.0 / d)                  # (br, g)
    mean_b = _dot01_2pass(mean, st)             # (br, 128) broadcast back
    diff = x - mean_b
    sq_sum = _dot01_2pass(diff * diff, s)       # (br, g)
    std = jnp.sqrt(sq_sum * inv_denom)          # unbiased (torch default)
    inv = pl.reciprocal(std + eps, approx=False)  # eps added to std (torch)
    inv_b = _dot01_2pass(inv, st)               # (br, 128)
    o_ref[...] = (diff * inv_b).astype(o_ref.dtype)


def _flex_ln_kernel_plain(x_ref, o_ref, *, eps, inv_denom):
    """D >= 128 (or non-divisor D): plain lane-axis reduction."""
    x = x_ref[...].astype(jnp.float32)
    mean = jnp.mean(x, axis=-1, keepdims=True)
    diff = x - mean
    var = jnp.sum(diff * diff, axis=-1, keepdims=True) * inv_denom
    inv = pl.reciprocal(jnp.sqrt(var) + eps, approx=False)
    o_ref[...] = (diff * inv).astype(o_ref.dtype)


def flexible_layer_norm(x, dim=-1, eps=1e-5, tile_bytes=2 << 20,
                        vmem_limit_bytes=None):
    """Normalize x over `dim` (int or list of ints), no trainable params.

    tile_bytes ~2 MiB is safe on all generations; ~4 MiB is fine on v5e/v6e.
    """
    ndim = x.ndim
    if isinstance(dim, (list, tuple)):
        dims = tuple(sorted(a % ndim for a in dim))
    else:
        dims = (dim % ndim,)
    keep = tuple(a for a in range(ndim) if a not in dims)
    perm = keep + dims
    needs_perm = perm != tuple(range(ndim))
    xp = jnp.transpose(x, perm) if needs_perm else x

    d = 1
    for a in dims:
        d *= x.shape[a]
    x2 = xp.reshape(-1, d)
    rows = x2.shape[0]
    elem_bytes = x2.dtype.itemsize
    inv_denom = 1.0 / float(max(d - 1, 1))  # torch unbiased; d==1 -> zeros, not NaN

    # ---- Lane-density fold: pack G = 128 // D rows into the lane axis. ----
    if d < 128 and 128 % d == 0:
        g = 128 // d
    else:
        g = 1
    pad_rows = (-rows) % g
    if pad_rows:
        x2 = jnp.concatenate(
            [x2, jnp.zeros((pad_rows, d), x2.dtype)], axis=0)
    rows_p = rows + pad_rows
    lane_d = g * d
    r = rows_p // g
    xk = x2.reshape(r, lane_d)

    # ---- Block-row sizing: dtype-aware sublane rounding, >=4 balanced steps.
    sub = max(8, 32 // elem_bytes)  # 8 for f32, 16 for bf16, 32 for int8/fp8
    if r <= sub:
        br = r
    else:
        budget_rows = max(sub, (tile_bytes // (lane_d * elem_bytes)) // sub * sub)
        # >= 4 roughly equal steps, even count preferred (v7x has 2 TCs),
        # capped so each block stays within the per-buffer VMEM budget.
        k = max(4, pl.cdiv(r, budget_rows))
        if k % 2:
            k += 1
        br = min(budget_rows, pl.cdiv(pl.cdiv(r, k), sub) * sub)
        br = max(sub, br)
    grid = (pl.cdiv(r, br),)

    # ---- VMEM limit derived from usage (not a fixed 48 MiB). ----
    block_bytes = br * lane_d * elem_bytes
    block_f32_bytes = br * lane_d * 4
    if vmem_limit_bytes is None:
        est = 2 * 2 * block_bytes + 10 * block_f32_bytes + (2 << 20)
        vmem_limit_bytes = int(min(max(est, 16 << 20), 64 << 20))

    if g > 1:
        # Static 0/1 segment matrices, built once host-side (bf16-exact),
        # passed as resident inputs (constant index_map -> fetched once).
        seg_of_lane = np.arange(lane_d) // d
        s_np = (seg_of_lane[:, None] == np.arange(g)[None, :]).astype(np.float32)
        s_mat = jnp.asarray(s_np, dtype=jnp.bfloat16)        # (lane_d, g)
        s_mat_t = jnp.asarray(s_np.T, dtype=jnp.bfloat16)    # (g, lane_d)

        kernel = functools.partial(
            _flex_ln_kernel_folded, eps=float(eps), d=d, inv_denom=inv_denom)
        in_specs = [
            pl.BlockSpec((br, lane_d), lambda i: (i, 0)),
            pl.BlockSpec((lane_d, g), lambda i: (0, 0)),
            pl.BlockSpec((g, lane_d), lambda i: (0, 0)),
        ]
        args = (xk, s_mat, s_mat_t)
    else:
        kernel = functools.partial(
            _flex_ln_kernel_plain, eps=float(eps), inv_denom=inv_denom)
        in_specs = [pl.BlockSpec((br, lane_d), lambda i: (i, 0))]
        args = (xk,)

    out = pl.pallas_call(
        kernel,
        out_shape=jax.ShapeDtypeStruct((r, lane_d), x2.dtype),
        grid_spec=pltpu.PrefetchScalarGridSpec(
            num_scalar_prefetch=0,
            grid=grid,
            in_specs=in_specs,
            out_specs=pl.BlockSpec((br, lane_d), lambda i: (i, 0)),
        ),
        compiler_params=pltpu.CompilerParams(
            dimension_semantics=("parallel",),
            vmem_limit_bytes=vmem_limit_bytes,
        ),
    )(*args)

    out = out.reshape(rows_p, d)
    if pad_rows:
        out = out[:rows]
    out = out.reshape(xp.shape)
    if needs_perm:
        inv_perm = [0] * ndim
        for i, p in enumerate(perm):
            inv_perm[p] = i
        out = jnp.transpose(out, inv_perm)
    return out


def _reference(x, dim=-1, eps=1e-5):
    # Pure-JAX reference mirroring torch semantics (unbiased std, eps on std).
    xf = x.astype(jnp.float32)
    dims = tuple(dim) if isinstance(dim, (list, tuple)) else (dim,)
    n = 1
    for a in dims:
        n *= x.shape[a]
    mean = jnp.mean(xf, axis=dims, keepdims=True)
    var = jnp.sum((xf - mean) ** 2, axis=dims, keepdims=True) / max(n - 1, 1)
    std = jnp.sqrt(var)
    return ((xf - mean) / (std + eps)).astype(x.dtype)


if __name__ == "__main__":
    k1, k2, k3 = jax.random.split(jax.random.PRNGKey(0), 3)

    # 1) NCHW input, normalize last dim (W=16 < 128 -> lane-dense fold path).
    x1 = jax.random.normal(k1, (2, 4, 16, 16), dtype=jnp.float32)
    out1 = jax.block_until_ready(flexible_layer_norm(x1, eps=1e-5))
    ref1 = _reference(x1, eps=1e-5)
    assert out1.shape == x1.shape and out1.dtype == x1.dtype
    assert float(jnp.max(jnp.abs(out1 - ref1))) < 1e-4

    # 2) Wide-feature input (D = 256 >= 128 -> plain lane-reduction path).
    x2 = jax.random.normal(k2, (2, 8, 256), dtype=jnp.float32)
    out2 = jax.block_until_ready(flexible_layer_norm(x2, eps=1e-5))
    ref2 = _reference(x2, eps=1e-5)
    assert out2.shape == x2.shape and out2.dtype == x2.dtype
    assert float(jnp.max(jnp.abs(out2 - ref2))) < 1e-4

    # 3) Small D with rows not a multiple of 128//D -> row-padded fold path.
    x3 = jax.random.normal(k3, (3, 5, 16), dtype=jnp.float32)
    out3 = jax.block_until_ready(flexible_layer_norm(x3, eps=1e-5))
    ref3 = _reference(x3, eps=1e-5)
    assert out3.shape == x3.shape and out3.dtype == x3.dtype
    assert float(jnp.max(jnp.abs(out3 - ref3))) < 1e-4

    print("KERNEL_OK")
</pallas_src>

<mosaic_0001>
module attributes {stable_mosaic.version = 11 : i64} {
  func.func @_flex_ln_kernel_folded(%arg0: i32, %arg1: memref<8x128xf32, #tpu.memory_space<vmem>>, %arg2: memref<128x8xbf16, #tpu.memory_space<vmem>>, %arg3: memref<8x128xbf16, #tpu.memory_space<vmem>>, %arg4: memref<8x128xf32, #tpu.memory_space<vmem>>) attributes {dimension_semantics = [#tpu.dimension_semantics<parallel>], iteration_bounds = array<i64: 2>, scalar_prefetch = 0 : i64, scratch_operands = 0 : i64, tpu.core_type = #tpu.core_type<tc>, window_params = [{transform_indices = @transform_0, window_bounds = array<i64: 8, 128>}, {pipeline_mode = #tpu.pipeline_mode<synchronous>, transform_indices = @transform_1, window_bounds = array<i64: 128, 8>}, {pipeline_mode = #tpu.pipeline_mode<synchronous>, transform_indices = @transform_2, window_bounds = array<i64: 8, 128>}, {transform_indices = @transform_3, window_bounds = array<i64: 8, 128>}]} {
    %c0 = arith.constant 0 : index
    %c0_0 = arith.constant 0 : index
    %0 = vector.load %arg1[%c0, %c0_0] : memref<8x128xf32, #tpu.memory_space<vmem>>, vector<8x128xf32>
    %c0_1 = arith.constant 0 : index
    %c0_2 = arith.constant 0 : index
    %1 = vector.load %arg2[%c0_1, %c0_2] : memref<128x8xbf16, #tpu.memory_space<vmem>>, vector<128x8xbf16>
    %c0_3 = arith.constant 0 : index
    %c0_4 = arith.constant 0 : index
    %2 = vector.load %arg3[%c0_3, %c0_4] : memref<8x128xbf16, #tpu.memory_space<vmem>>, vector<8x128xbf16>
    %3 = arith.truncf %0 : vector<8x128xf32> to vector<8x128xbf16>
    %4 = arith.extf %3 : vector<8x128xbf16> to vector<8x128xf32>
    %5 = arith.subf %0, %4 : vector<8x128xf32>
    %6 = arith.truncf %5 : vector<8x128xf32> to vector<8x128xbf16>
    %cst = arith.constant dense<0.000000e+00> : vector<8x8xf32>
    %7 = tpu.matmul %3, %1, %cst {dimension_numbers = #tpu.dot_dimension_numbers<[1], [0], [0], [1], [0, 0, 1, 1], [], []>} : vector<8x128xbf16>, vector<128x8xbf16>, vector<8x8xf32> -> vector<8x8xf32>
    %cst_5 = arith.constant dense<0.000000e+00> : vector<8x8xf32>
    %8 = tpu.matmul %6, %1, %cst_5 {dimension_numbers = #tpu.dot_dimension_numbers<[1], [0], [0], [1], [0, 0, 1, 1], [], []>} : vector<8x128xbf16>, vector<128x8xbf16>, vector<8x8xf32> -> vector<8x8xf32>
    %9 = arith.addf %7, %8 : vector<8x8xf32>
    %cst_6 = arith.constant 6.250000e-02 : f32
    %10 = vector.broadcast %cst_6 : f32 to vector<8x8xf32>
    %11 = arith.mulf %9, %10 : vector<8x8xf32>
    %12 = arith.truncf %11 : vector<8x8xf32> to vector<8x8xbf16>
    %13 = arith.extf %12 : vector<8x8xbf16> to vector<8x8xf32>
    %14 = arith.subf %11, %13 : vector<8x8xf32>
    %15 = arith.truncf %14 : vector<8x8xf32> to vector<8x8xbf16>
    %cst_7 = arith.constant dense<0.000000e+00> : vector<8x128xf32>
    %16 = tpu.matmul %12, %2, %cst_7 {dimension_numbers = #tpu.dot_dimension_numbers<[1], [0], [0], [1], [0, 0, 1, 1], [], []>} : vector<8x8xbf16>, vector<8x128xbf16>, vector<8x128xf32> -> vector<8x128xf32>
    %cst_8 = arith.constant dense<0.000000e+00> : vector<8x128xf32>
    %17 = tpu.matmul %15, %2, %cst_8 {dimension_numbers = #tpu.dot_dimension_numbers<[1], [0], [0], [1], [0, 0, 1, 1], [], []>} : vector<8x8xbf16>, vector<8x128xbf16>, vector<8x128xf32> -> vector<8x128xf32>
    %18 = arith.addf %16, %17 : vector<8x128xf32>
    %19 = arith.subf %0, %18 : vector<8x128xf32>
    %20 = arith.mulf %19, %19 : vector<8x128xf32>
    %21 = arith.truncf %20 : vector<8x128xf32> to vector<8x128xbf16>
    %22 = arith.extf %21 : vector<8x128xbf16> to vector<8x128xf32>
    %23 = arith.subf %20, %22 : vector<8x128xf32>
    %24 = arith.truncf %23 : vector<8x128xf32> to vector<8x128xbf16>
    %cst_9 = arith.constant dense<0.000000e+00> : vector<8x8xf32>
    %25 = tpu.matmul %21, %1, %cst_9 {dimension_numbers = #tpu.dot_dimension_numbers<[1], [0], [0], [1], [0, 0, 1, 1], [], []>} : vector<8x128xbf16>, vector<128x8xbf16>, vector<8x8xf32> -> vector<8x8xf32>
    %cst_10 = arith.constant dense<0.000000e+00> : vector<8x8xf32>
    %26 = tpu.matmul %24, %1, %cst_10 {dimension_numbers = #tpu.dot_dimension_numbers<[1], [0], [0], [1], [0, 0, 1, 1], [], []>} : vector<8x128xbf16>, vector<128x8xbf16>, vector<8x8xf32> -> vector<8x8xf32>
    %27 = arith.addf %25, %26 : vector<8x8xf32>
    %cst_11 = arith.constant 0.0666666701 : f32
    %28 = vector.broadcast %cst_11 : f32 to vector<8x8xf32>
    %29 = arith.mulf %27, %28 : vector<8x8xf32>
    %30 = math.sqrt %29 : vector<8x8xf32>
    %cst_12 = arith.constant 9.99999974E-6 : f32
    %31 = vector.broadcast %cst_12 : f32 to vector<8x8xf32>
    %32 = arith.addf %30, %31 : vector<8x8xf32>
    %33 = tpu.reciprocal %32 : vector<8x8xf32> -> vector<8x8xf32>
    %34 = arith.truncf %33 : vector<8x8xf32> to vector<8x8xbf16>
    %35 = arith.extf %34 : vector<8x8xbf16> to vector<8x8xf32>
    %36 = arith.subf %33, %35 : vector<8x8xf32>
    %37 = arith.truncf %36 : vector<8x8xf32> to vector<8x8xbf16>
    %cst_13 = arith.constant dense<0.000000e+00> : vector<8x128xf32>
    %38 = tpu.matmul %34, %2, %cst_13 {dimension_numbers = #tpu.dot_dimension_numbers<[1], [0], [0], [1], [0, 0, 1, 1], [], []>} : vector<8x8xbf16>, vector<8x128xbf16>, vector<8x128xf32> -> vector<8x128xf32>
    %cst_14 = arith.constant dense<0.000000e+00> : vector<8x128xf32>
    %39 = tpu.matmul %37, %2, %cst_14 {dimension_numbers = #tpu.dot_dimension_numbers<[1], [0], [0], [1], [0, 0, 1, 1], [], []>} : vector<8x8xbf16>, vector<8x128xbf16>, vector<8x128xf32> -> vector<8x128xf32>
    %40 = arith.addf %38, %39 : vector<8x128xf32>
    %41 = arith.mulf %19, %40 : vector<8x128xf32>
    %c0_15 = arith.constant 0 : index
    %c0_16 = arith.constant 0 : index
    %42 = vector.load %arg4[%c0_15, %c0_16] : memref<8x128xf32, #tpu.memory_space<vmem>>, vector<8x128xf32>
    tpu.vector_store %arg4[%c0_15, %c0_16], %41 {strides = array<i32>} : memref<8x128xf32, #tpu.memory_space<vmem>>, vector<8x128xf32>,
    return
  }
  func.func @transform_0(%arg0: i32) -> (i32, i32) {
    %c0_i32 = arith.constant 0 : i32
    %c0_i32_0 = arith.constant 0 : i32
    return %arg0, %c0_i32 : i32, i32
  }
  func.func @transform_1(%arg0: i32) -> (i32, i32) {
    %c0_i32 = arith.constant 0 : i32
    %c0_i32_0 = arith.constant 0 : i32
    %c0_i32_1 = arith.constant 0 : i32
    return %c0_i32, %c0_i32_0 : i32, i32
  }
  func.func @transform_2(%arg0: i32) -> (i32, i32) {
    %c0_i32 = arith.constant 0 : i32
    %c0_i32_0 = arith.constant 0 : i32
    %c0_i32_1 = arith.constant 0 : i32
    return %c0_i32, %c0_i32_0 : i32, i32
  }
  func.func @transform_3(%arg0: i32) -> (i32, i32) {
    %c0_i32 = arith.constant 0 : i32
    %c0_i32_0 = arith.constant 0 : i32
    return %arg0, %c0_i32 : i32, i32
  }
}

</mosaic_0001>

<llo_original>
// kernel: tpu_custom_call.1
$region0: #{tpu_custom_call.1}
  #allocation0 [shape = 'u32[]', space=smem, size = 0x4, offset = 0x4, fixed_abs, tag = 'smem constant byte address 0x4 - core index']
  #allocation1 [shape = 'u32[144,128]{1,0:T(1,128)}', space=vmem, size = 0x12000, scoped, tag = 'internal scratch']
  %s0 = inlined_call_operand.vmem [shape: f32[16,128], index: 0, kind: input, shape index: {}]
  %s1 = inlined_call_operand.vmem [shape: bf16[128,8], index: 1, kind: input, shape index: {}]
  %s2 = inlined_call_operand.vmem [shape: bf16[8,128], index: 2, kind: input, shape index: {}]
  %s3 = inlined_call_operand.hbm [shape: f32[16,128], index: 3, kind: output, shape index: {}]
  %s4 = sld [smem:[#allocation0]]
  $region45: #{tpu_custom_call.1} parent=0
    _
  %s6 = ssub.s32 1, %s4
  %s7 = scalar_select 0, %s6, %s4
  $region1: #{tpu_custom_call.1} parent=0
    #allocation2 [shape = 'u8[8192]{0}', space=vmem, size = 0x2000, scoped, tag = 'output window, operand 0']
    #allocation3 [shape = 's32[2]{0}', space=sflag, size = 0x8, scoped, tag = 'scoped memory for tpu_custom_call.1']
    %8 = vsyncpa [#allocation3], 0
    %s9 = scalar_lea.sflag [#allocation3], 1
    %10 = vsyncpa %s9, 0
    loop: start=0, step=1, limit=4
    $region2: #{tpu_custom_call.1} parent=1 // loop_pre_header
      _
    $region3: #{tpu_custom_call.1} parent=1 // loop_header
      %s12 = sphi 0, %s16
      %p13 = scmp.ge.s32.totalorder %s12, 4
      %s22 = sphi 0, %s24
      %s25 = sphi 0, %s22
      %s26 = sphi 0, %s25
      %s42 = sphi 0, %s26
      %s46 = sphi 0, %s46
      %s48 = sphi 0, %s46
      %s49 = sphi 0, %s48
      %s63 = sphi 0, %s49
      %s67 = sphi 0, %s67
      %s69 = sphi 0, %s67
      %s70 = sphi 0, %s69
      %s84 = sphi 0, %s70
      %s90 = sphi 0, %s92
      %s93 = sphi 0, %s90
      %s94 = sphi 0, %s93
      %s110 = sphi 0, %s94
    $region4: #{tpu_custom_call.1} parent=1 // loop_header_branch
      %15 = sbr.rel (%p13) target = $region8
    $region5: #{tpu_custom_call.1} parent=1 // loop_body
      %s17 = ssub.s32 %s12, 1
      %s18 = ssub.s32 %s12, 2
      %s19 = sadd.s32 %s12, 1
      %s20 = ssub.s32 %s12, %s19
      %p21 = scmp.eq.s32.totalorder %s20, 0
      %s23 = sadd.s32 %s22, 1
      %s24 = scalar_select %p21, %s22, %s23
      %p27 = pneg %p21
      %p28 = scmp.eq.s32.totalorder %s12, 1
      %p29 = por %p27, %p28
      %p30 = scmp.ne.s32.totalorder %s22, %s25
      %p31 = scmp.eq.s32.totalorder %s12, 0
      %p32 = por %p30, %p31
      %p33 = scmp.ne.s32.totalorder %s22, %s25
      %p34 = scmp.eq.s32.totalorder %s17, 1
      %p35 = por %p33, %p34
      %p36 = scmp.ne.s32.totalorder %s25, %s26
      %p37 = scmp.eq.s32.totalorder %s17, 0
      %p38 = por %p36, %p37
      %p39 = scmp.ne.s32.totalorder %s25, %s26
      %p40 = scmp.eq.s32.totalorder %s18, 1
      %p41 = por %p39, %p40
      %p43 = scmp.ne.s32.totalorder %s26, %s42
      %p44 = scmp.eq.s32.totalorder %s18, 0
      %p45 = por %p43, %p44
      %s47 = sadd.s32 %s46, 1
      %p50 = scmp.eq.s32.totalorder %s12, 1
      %p51 = scmp.ne.s32.totalorder %s46, %s48
      %p52 = scmp.eq.s32.totalorder %s12, 0
      %p53 = por %p51, %p52
      %p54 = scmp.ne.s32.totalorder %s46, %s48
      %p55 = scmp.eq.s32.totalorder %s17, 1
      %p56 = por %p54, %p55
      %p57 = scmp.ne.s32.totalorder %s48, %s49
      %p58 = scmp.eq.s32.totalorder %s17, 0
      %p59 = por %p57, %p58
      %p60 = scmp.ne.s32.totalorder %s48, %s49
      %p61 = scmp.eq.s32.totalorder %s18, 1
      %p62 = por %p60, %p61
      %p64 = scmp.ne.s32.totalorder %s49, %s63
      %p65 = scmp.eq.s32.totalorder %s18, 0
      %p66 = por %p64, %p65
      %s68 = sadd.s32 %s67, 1
      %p71 = scmp.eq.s32.totalorder %s12, 1
      %p72 = scmp.ne.s32.totalorder %s67, %s69
      %p73 = scmp.eq.s32.totalorder %s12, 0
      %p74 = por %p72, %p73
      %p75 = scmp.ne.s32.totalorder %s67, %s69
      %p76 = scmp.eq.s32.totalorder %s17, 1
      %p77 = por %p75, %p76
      %p78 = scmp.ne.s32.totalorder %s69, %s70
      %p79 = scmp.eq.s32.totalorder %s17, 0
      %p80 = por %p78, %p79
      %p81 = scmp.ne.s32.totalorder %s69, %s70
      %p82 = scmp.eq.s32.totalorder %s18, 1
      %p83 = por %p81, %p82
      %p85 = scmp.ne.s32.totalorder %s70, %s84
      %p86 = scmp.eq.s32.totalorder %s18, 0
      %p87 = por %p85, %p86
      %s88 = ssub.s32 %s12, %s19
      %p89 = scmp.eq.s32.totalorder %s88, 0
      %s91 = sadd.s32 %s90, 1
      %s92 = scalar_select %p89, %s90, %s91
      %p95 = pneg %p89
      %p96 = scmp.eq.s32.totalorder %s12, 1
      %p97 = por %p95, %p96
      %p98 = scmp.ne.s32.totalorder %s90, %s93
      %p99 = scmp.eq.s32.totalorder %s12, 0
      %p100 = por %p98, %p99
      %p101 = scmp.ne.s32.totalorder %s90, %s93
      %p102 = scmp.eq.s32.totalorder %s17, 1
      %p103 = por %p101, %p102
      %p104 = scmp.ne.s32.totalorder %s93, %s94
      %p105 = scmp.eq.s32.totalorder %s17, 0
      %p106 = por %p104, %p105
      %p107 = scmp.ne.s32.totalorder %s93, %s94
      %p108 = scmp.eq.s32.totalorder %s18, 1
      %p109 = por %p107, %p108
      %p111 = scmp.ne.s32.totalorder %s94, %s110
      %p112 = scmp.eq.s32.totalorder %s18, 0
      %p113 = por %p111, %p112
      %p114 = scmp.le.s32.totalorder 1, %s12
      %p115 = scmp.lt.s32.totalorder %s12, 3
      %p116 = pnand %p114, %p115
      %p117 = pneg %p116
      // Predicated region
      $region9: #{tpu_custom_call.1} parent=5 // pred_check
        _
      $region10: #{tpu_custom_call.1} parent=5 // pred_check_branch
        %119 = sbr.rel (%p116) target = $region12
      $region11: #{tpu_custom_call.1} parent=5 // pred_region
        %s120 = ssub.s32 %s12, 1
        // Predicated region
        $region13: #{tpu_custom_call.1} parent=11 // pred_check
          %p121 = pneg %p59
        $region14: #{tpu_custom_call.1} parent=11 // pred_check_branch
          %123 = sbr.rel (%p121) target = $region16
        $region15: #{tpu_custom_call.1} parent=11 // pred_region
          _
        $region16: #{tpu_custom_call.1} parent=11 // pred_fallthru
          _
        // Predicated region
        $region17: #{tpu_custom_call.1} parent=11 // pred_check
          %p124 = pneg %p80
        $region18: #{tpu_custom_call.1} parent=11 // pred_check_branch
          %126 = sbr.rel (%p124) target = $region20
        $region19: #{tpu_custom_call.1} parent=11 // pred_region
          _
        $region20: #{tpu_custom_call.1} parent=11 // pred_fallthru
          _
      $region12: #{tpu_custom_call.1} parent=5 // pred_fallthru
        _
      %p127 = scmp.lt.s32.totalorder %s12, 2
      // Predicated region
      $region21: #{tpu_custom_call.1} parent=5 // pred_check
        %p128 = pneg %p127
      $region22: #{tpu_custom_call.1} parent=5 // pred_check_branch
        %130 = sbr.rel (%p128) target = $region24
      $region23: #{tpu_custom_call.1} parent=5 // pred_region
        // Predicated region
        $region25: #{tpu_custom_call.1} parent=23 // pred_check
          %p131 = pneg %p32
        $region26: #{tpu_custom_call.1} parent=23 // pred_check_branch
          %133 = sbr.rel (%p131) target = $region28
        $region27: #{tpu_custom_call.1} parent=23 // pred_region
          %p134 = scmp.lt.s32.totalorder %s12, 1
          %s135 = scalar_select %p134, %s12, 1
          %s136 = smul.addr %s135, 8
          %s137 = scalar_lea.vmem %s0, %s136
        $region28: #{tpu_custom_call.1} parent=23 // pred_fallthru
          _
      $region24: #{tpu_custom_call.1} parent=5 // pred_fallthru
        _
      %p138 = scmp.le.s32.totalorder 1, %s12
      %p139 = scmp.lt.s32.totalorder %s12, 3
      %p140 = pnand %p138, %p139
      %p141 = pneg %p140
      // Predicated region
      $region29: #{tpu_custom_call.1} parent=5 // pred_check
        _
      $region30: #{tpu_custom_call.1} parent=5 // pred_check_branch
        %143 = sbr.rel (%p140) target = $region32
      $region31: #{tpu_custom_call.1} parent=5 // pred_region
        %s144 = ssub.s32 %s12, 1
        %p145 = scmp.lt.s32.totalorder %s17, 1
        %s146 = scalar_select %p145, %s17, 1
        %s147 = smul.addr %s146, 8
        %s148 = scalar_lea.vmem %s0, %s147
        %p149 = pneg %p38
        %p150 = pneg %p35
        %p151 = pneg %p59
        %p152 = pneg %p56
        %p153 = pneg %p80
        %p154 = pneg %p77
        %p155 = pneg %p106
        %p156 = pneg %p103
        %s157 = sand.u32 %s93, 1
        %s158 = scalar_lea.sflag [#allocation3], %s157
        %s159 = sand.u32 %s93, 1
        %s160 = smul.addr %s159, 8
        %s161 = scalar_lea.vmem [#allocation2], %s160
        %p162 = scmp.lt.s32.totalorder %s17, 1
        %s163 = scalar_select %p162, %s17, 1
        %s164 = smul.addr %s163, 8
        %s165 = scalar_lea.vmem %s0, %s164
        %v167 = vld [vmem:[%s165] sm:$0xff]
        %v168 = vld [vmem:[%s1] sm:$0xf]
        %v169 = vld [vmem:[%s1 + $0x4] sm:$0xf]
        %v170 = vld [vmem:[%s1 + $0x8] sm:$0xf]
        %v171 = vld [vmem:[%s1 + $0xc] sm:$0xf]
        %v172 = vld [vmem:[%s1 + $0x10] sm:$0xf]
        %v173 = vld [vmem:[%s1 + $0x14] sm:$0xf]
        %v174 = vld [vmem:[%s1 + $0x18] sm:$0xf]
        %v175 = vld [vmem:[%s1 + $0x1c] sm:$0xf]
        %v176 = vld [vmem:[%s1 + $0x20] sm:$0xf]
        %v177 = vld [vmem:[%s1 + $0x24] sm:$0xf]
        %v178 = vld [vmem:[%s1 + $0x28] sm:$0xf]
        %v179 = vld [vmem:[%s1 + $0x2c] sm:$0xf]
        %v180 = vld [vmem:[%s1 + $0x30] sm:$0xf]
        %v181 = vld [vmem:[%s1 + $0x34] sm:$0xf]
        %v182 = vld [vmem:[%s1 + $0x38] sm:$0xf]
        %v183 = vld [vmem:[%s1 + $0x3c] sm:$0xf]
        %v184 = vld [vmem:[%s2] sm:$0xf]
        %v185 = vpack.c.bf16 %v167, %v167
        %v186 = vunpack.c.l.bf16 %v185
        %v187 = vsub.f32 %v167, %v186
        %v188 = vpack.c.bf16 %v187, %v187
        %v205 = vunpack.c.l.b16 %v168
        %v206 = vunpack.c.l.b16 %v169
        %v207 = vunpack.c.l.b16 %v170
        %v208 = vunpack.c.l.b16 %v171
        %v209 = vunpack.c.l.b16 %v172
        %v210 = vunpack.c.l.b16 %v173
        %v211 = vunpack.c.l.b16 %v174
        %v212 = vunpack.c.l.b16 %v175
        %v213 = vunpack.c.l.b16 %v176
        %v214 = vunpack.c.l.b16 %v177
        %v215 = vunpack.c.l.b16 %v178
        %v216 = vunpack.c.l.b16 %v179
        %v217 = vunpack.c.l.b16 %v180
        %v218 = vunpack.c.l.b16 %v181
        %v219 = vunpack.c.l.b16 %v182
        %v220 = vunpack.c.l.b16 %v183
        %v221 = vpack.c.b16 %v206, %v205
        %v222 = vpack.c.b16 %v208, %v207
        %v223 = vpack.c.b16 %v210, %v209
        %v224 = vpack.c.b16 %v212, %v211
        %v225 = vpack.c.b16 %v214, %v213
        %v226 = vpack.c.b16 %v216, %v215
        %v227 = vpack.c.b16 %v218, %v217
        %v228 = vpack.c.b16 %v220, %v219
        %237 = vmatprep.subr.bf16.mxu0 0
        %238 = vmatpush1.bf16.msra.mxu0 %v221
        %239 = vmatprep.subr.bf16.mxu0 0
        %240 = vmatpush1.bf16.msra.mxu0 %v222
        %241 = vmatprep.subr.bf16.mxu0 0
        %242 = vmatpush1.bf16.msra.mxu0 %v223
        %243 = vmatprep.subr.bf16.mxu0 0
        %244 = vmatpush1.bf16.msra.mxu0 %v224
        %245 = vmatprep.subr.bf16.mxu0 0
        %246 = vmatpush1.bf16.msra.mxu0 %v225
        %247 = vmatprep.subr.bf16.mxu0 0
        %248 = vmatpush1.bf16.msra.mxu0 %v226
        %249 = vmatprep.subr.bf16.mxu0 0
        %250 = vmatpush1.bf16.msra.mxu0 %v227
        %251 = vmatprep.subr.bf16.mxu0 0
        %252 = vmatpush1.bf16.msra.mxu0 %v228
        %253 = vmatprep.subr.bf16.mxu0 0
        %254 = vmatpush1.bf16.msra.mxu0 0
        %255 = vmatprep.subr.bf16.mxu0 0
        %256 = vmatpush1.bf16.msra.mxu0 0
        %257 = vmatprep.subr.bf16.mxu0 0
        %258 = vmatpush1.bf16.msra.mxu0 0
        %259 = vmatprep.subr.bf16.mxu0 0
        %260 = vmatpush1.bf16.msra.mxu0 0
        %261 = vmatprep.subr.bf16.mxu0 0
        %262 = vmatpush1.bf16.msra.mxu0 0
        %263 = vmatprep.subr.bf16.mxu0 0
        %264 = vmatpush1.bf16.msra.mxu0 0
        %265 = vmatprep.subr.bf16.mxu0 0
        %266 = vmatpush1.bf16.msra.mxu0 0
        %267 = vmatprep.subr.bf16.mxu0 0
        %268 = vmatpush1.bf16.msra.mxu0 0
        %269 = vmatprep.mubr.bf16.mxu0 0
        %270 = vmatmul.mubr.bf16.gmra.mrb[0].mxu0 %v188
        %v271 = vpop.f32.mrb[0].mxu0
        %v272 = vadd.f32 0.0, %v271
        %v273 = vpop.f32.mrb[0].mxu0
        %v274 = vpop.f32.mrb[0].mxu0
        %v275 = vpop.f32.mrb[0].mxu0
        %276 = vdwg.mxu0
        %277 = vmatprep.subr.bf16.mxu0 0
        %278 = vmatpush1.bf16.msra.mxu0 %v221
        %279 = vmatprep.subr.bf16.mxu0 0
        %280 = vmatpush1.bf16.msra.mxu0 %v222
        %281 = vmatprep.subr.bf16.mxu0 0
        %282 = vmatpush1.bf16.msra.mxu0 %v223
        %283 = vmatprep.subr.bf16.mxu0 0
        %284 = vmatpush1.bf16.msra.mxu0 %v224
        %285 = vmatprep.subr.bf16.mxu0 0
        %286 = vmatpush1.bf16.msra.mxu0 %v225
        %287 = vmatprep.subr.bf16.mxu0 0
        %288 = vmatpush1.bf16.msra.mxu0 %v226
        %289 = vmatprep.subr.bf16.mxu0 0
        %290 = vmatpush1.bf16.msra.mxu0 %v227
        %291 = vmatprep.subr.bf16.mxu0 0
        %292 = vmatpush1.bf16.msra.mxu0 %v228
        %293 = vmatprep.subr.bf16.mxu0 0
        %294 = vmatpush1.bf16.msra.mxu0 0
        %295 = vmatprep.subr.bf16.mxu0 0
        %296 = vmatpush1.bf16.msra.mxu0 0
        %297 = vmatprep.subr.bf16.mxu0 0
        %298 = vmatpush1.bf16.msra.mxu0 0
        %299 = vmatprep.subr.bf16.mxu0 0
        %300 = vmatpush1.bf16.msra.mxu0 0
        %301 = vmatprep.subr.bf16.mxu0 0
        %302 = vmatpush1.bf16.msra.mxu0 0
        %303 = vmatprep.subr.bf16.mxu0 0
        %304 = vmatpush1.bf16.msra.mxu0 0
        %305 = vmatprep.subr.bf16.mxu0 0
        %306 = vmatpush1.bf16.msra.mxu0 0
        %307 = vmatprep.subr.bf16.mxu0 0
        %308 = vmatpush1.bf16.msra.mxu0 0
        %309 = vmatprep.mubr.bf16.mxu0 0
        %310 = vmatmul.mubr.bf16.gmra.mrb[0].mxu0 %v185
        %v311 = vpop.f32.mrb[0].mxu0
        %v312 = vadd.f32 %v272, %v311
        %v313 = vpop.f32.mrb[0].mxu0
        %v314 = vpop.f32.mrb[0].mxu0
        %v315 = vpop.f32.mrb[0].mxu0
        %316 = vdwg.mxu0
        %v317 = vmul.f32 %v312, 0.0625
        %v318 = vpack.c.bf16 %v317, %v317
        %v319 = vunpack.c.l.bf16 %v318
        %v320 = vsub.f32 %v317, %v319
        %v321 = vpack.c.bf16 %v320, %v320
        %vm322 = vcmask 64512
        %v324 = vsel %vm322, %v321, 0
        %vm326 = vcmask 1043456
        %v328 = vsel %vm326, %v184, 0
        %330 = vmatprep.subr.bf16.mxu0 0
        %331 = vmatpush1.bf16.msra.mxu0 %v328
        %332 = vmatprep.subr.bf16.mxu0 0
        %333 = vmatpush1.bf16.msra.mxu0 0
        %334 = vmatprep.subr.bf16.mxu0 0
        %335 = vmatpush1.bf16.msra.mxu0 0
        %336 = vmatprep.subr.bf16.mxu0 0
        %337 = vmatpush1.bf16.msra.mxu0 0
        %338 = vmatprep.subr.bf16.mxu0 0
        %339 = vmatpush1.bf16.msra.mxu0 0
        %340 = vmatprep.subr.bf16.mxu0 0
        %341 = vmatpush1.bf16.msra.mxu0 0
        %342 = vmatprep.subr.bf16.mxu0 0
        %343 = vmatpush1.bf16.msra.mxu0 0
        %344 = vmatprep.subr.bf16.mxu0 0
        %345 = vmatpush1.bf16.msra.mxu0 0
        %346 = vmatprep.subr.bf16.mxu0 0
        %347 = vmatpush1.bf16.msra.mxu0 0
        %348 = vmatprep.subr.bf16.mxu0 0
        %349 = vmatpush1.bf16.msra.mxu0 0
        %350 = vmatprep.subr.bf16.mxu0 0
        %351 = vmatpush1.bf16.msra.mxu0 0
        %352 = vmatprep.subr.bf16.mxu0 0
        %353 = vmatpush1.bf16.msra.mxu0 0
        %354 = vmatprep.subr.bf16.mxu0 0
        %355 = vmatpush1.bf16.msra.mxu0 0
        %356 = vmatprep.subr.bf16.mxu0 0
        %357 = vmatpush1.bf16.msra.mxu0 0
        %358 = vmatprep.subr.bf16.mxu0 0
        %359 = vmatpush1.bf16.msra.mxu0 0
        %360 = vmatprep.subr.bf16.mxu0 0
        %361 = vmatpush1.bf16.msra.mxu0 0
        %362 = vmatprep.mubr.bf16.mxu0 0
        %363 = vmatmul.mubr.bf16.gmra.mrb[0].mxu0 %v324
        %v364 = vpop.f32.mrb[0].mxu0
        %v365 = vadd.f32 0.0, %v364
        %v366 = vpop.f32.mrb[0].mxu0
        %v367 = vpop.f32.mrb[0].mxu0
        %v368 = vpop.f32.mrb[0].mxu0
        %369 = vdwg.mxu0
        %v371 = vsel %vm322, %v318, 0
        %373 = vmatprep.subr.bf16.mxu0 0
        %374 = vmatpush1.bf16.msra.mxu0 %v328
        %375 = vmatprep.subr.bf16.mxu0 0
        %376 = vmatpush1.bf16.msra.mxu0 0
        %377 = vmatprep.subr.bf16.mxu0 0
        %378 = vmatpush1.bf16.msra.mxu0 0
        %379 = vmatprep.subr.bf16.mxu0 0
        %380 = vmatpush1.bf16.msra.mxu0 0
        %381 = vmatprep.subr.bf16.mxu0 0
        %382 = vmatpush1.bf16.msra.mxu0 0
        %383 = vmatprep.subr.bf16.mxu0 0
        %384 = vmatpush1.bf16.msra.mxu0 0
        %385 = vmatprep.subr.bf16.mxu0 0
        %386 = vmatpush1.bf16.msra.mxu0 0
        %387 = vmatprep.subr.bf16.mxu0 0
        %388 = vmatpush1.bf16.msra.mxu0 0
        %389 = vmatprep.subr.bf16.mxu0 0
        %390 = vmatpush1.bf16.msra.mxu0 0
        %391 = vmatprep.subr.bf16.mxu0 0
        %392 = vmatpush1.bf16.msra.mxu0 0
        %393 = vmatprep.subr.bf16.mxu0 0
        %394 = vmatpush1.bf16.msra.mxu0 0
        %395 = vmatprep.subr.bf16.mxu0 0
        %396 = vmatpush1.bf16.msra.mxu0 0
        %397 = vmatprep.subr.bf16.mxu0 0
        %398 = vmatpush1.bf16.msra.mxu0 0
        %399 = vmatprep.subr.bf16.mxu0 0
        %400 = vmatpush1.bf16.msra.mxu0 0
        %401 = vmatprep.subr.bf16.mxu0 0
        %402 = vmatpush1.bf16.msra.mxu0 0
        %403 = vmatprep.subr.bf16.mxu0 0
        %404 = vmatpush1.bf16.msra.mxu0 0
        %405 = vmatprep.mubr.bf16.mxu0 0
        %406 = vmatmul.mubr.bf16.gmra.mrb[0].mxu0 %v371
        %v407 = vpop.f32.mrb[0].mxu0
        %v408 = vadd.f32 %v365, %v407
        %v409 = vpop.f32.mrb[0].mxu0
        %v410 = vpop.f32.mrb[0].mxu0
        %v411 = vpop.f32.mrb[0].mxu0
        %412 = vdwg.mxu0
        %v413 = vsub.f32 %v167, %v408
        %v414 = vmul.f32 %v413, %v413
        %v415 = vpack.c.bf16 %v414, %v414
        %v416 = vunpack.c.l.bf16 %v415
        %v417 = vsub.f32 %v414, %v416
        %v418 = vpack.c.bf16 %v417, %v417
        %419 = vmatprep.subr.bf16.mxu0 0
        %420 = vmatpush1.bf16.msra.mxu0 %v221
        %421 = vmatprep.subr.bf16.mxu0 0
        %422 = vmatpush1.bf16.msra.mxu0 %v222
        %423 = vmatprep.subr.bf16.mxu0 0
        %424 = vmatpush1.bf16.msra.mxu0 %v223
        %425 = vmatprep.subr.bf16.mxu0 0
        %426 = vmatpush1.bf16.msra.mxu0 %v224
        %427 = vmatprep.subr.bf16.mxu0 0
        %428 = vmatpush1.bf16.msra.mxu0 %v225
        %429 = vmatprep.subr.bf16.mxu0 0
        %430 = vmatpush1.bf16.msra.mxu0 %v226
        %431 = vmatprep.subr.bf16.mxu0 0
        %432 = vmatpush1.bf16.msra.mxu0 %v227
        %433 = vmatprep.subr.bf16.mxu0 0
        %434 = vmatpush1.bf16.msra.mxu0 %v228
        %435 = vmatprep.subr.bf16.mxu0 0
        %436 = vmatpush1.bf16.msra.mxu0 0
        %437 = vmatprep.subr.bf16.mxu0 0
        %438 = vmatpush1.bf16.msra.mxu0 0
        %439 = vmatprep.subr.bf16.mxu0 0
        %440 = vmatpush1.bf16.msra.mxu0 0
        %441 = vmatprep.subr.bf16.mxu0 0
        %442 = vmatpush1.bf16.msra.mxu0 0
        %443 = vmatprep.subr.bf16.mxu0 0
        %444 = vmatpush1.bf16.msra.mxu0 0
        %445 = vmatprep.subr.bf16.mxu0 0
        %446 = vmatpush1.bf16.msra.mxu0 0
        %447 = vmatprep.subr.bf16.mxu0 0
        %448 = vmatpush1.bf16.msra.mxu0 0
        %449 = vmatprep.subr.bf16.mxu0 0
        %450 = vmatpush1.bf16.msra.mxu0 0
        %451 = vmatprep.mubr.bf16.mxu0 0
        %452 = vmatmul.mubr.bf16.gmra.mrb[0].mxu0 %v418
        %v453 = vpop.f32.mrb[0].mxu0
        %v454 = vadd.f32 0.0, %v453
        %v455 = vpop.f32.mrb[0].mxu0
        %v456 = vpop.f32.mrb[0].mxu0
        %v457 = vpop.f32.mrb[0].mxu0
        %458 = vdwg.mxu0
        %459 = vmatprep.subr.bf16.mxu0 0
        %460 = vmatpush1.bf16.msra.mxu0 %v221
        %461 = vmatprep.subr.bf16.mxu0 0
        %462 = vmatpush1.bf16.msra.mxu0 %v222
        %463 = vmatprep.subr.bf16.mxu0 0
        %464 = vmatpush1.bf16.msra.mxu0 %v223
        %465 = vmatprep.subr.bf16.mxu0 0
        %466 = vmatpush1.bf16.msra.mxu0 %v224
        %467 = vmatprep.subr.bf16.mxu0 0
        %468 = vmatpush1.bf16.msra.mxu0 %v225
        %469 = vmatprep.subr.bf16.mxu0 0
        %470 = vmatpush1.bf16.msra.mxu0 %v226
        %471 = vmatprep.subr.bf16.mxu0 0
        %472 = vmatpush1.bf16.msra.mxu0 %v227
        %473 = vmatprep.subr.bf16.mxu0 0
        %474 = vmatpush1.bf16.msra.mxu0 %v228
        %475 = vmatprep.subr.bf16.mxu0 0
        %476 = vmatpush1.bf16.msra.mxu0 0
        %477 = vmatprep.subr.bf16.mxu0 0
        %478 = vmatpush1.bf16.msra.mxu0 0
        %479 = vmatprep.subr.bf16.mxu0 0
        %480 = vmatpush1.bf16.msra.mxu0 0
        %481 = vmatprep.subr.bf16.mxu0 0
        %482 = vmatpush1.bf16.msra.mxu0 0
        %483 = vmatprep.subr.bf16.mxu0 0
        %484 = vmatpush1.bf16.msra.mxu0 0
        %485 = vmatprep.subr.bf16.mxu0 0
        %486 = vmatpush1.bf16.msra.mxu0 0
        %487 = vmatprep.subr.bf16.mxu0 0
        %488 = vmatpush1.bf16.msra.mxu0 0
        %489 = vmatprep.subr.bf16.mxu0 0
        %490 = vmatpush1.bf16.msra.mxu0 0
        %491 = vmatprep.mubr.bf16.mxu0 0
        %492 = vmatmul.mubr.bf16.gmra.mrb[0].mxu0 %v415
        %v493 = vpop.f32.mrb[0].mxu0
        %v494 = vadd.f32 %v454, %v493
        %v495 = vpop.f32.mrb[0].mxu0
        %v496 = vpop.f32.mrb[0].mxu0
        %v497 = vpop.f32.mrb[0].mxu0
        %498 = vdwg.mxu0
        %v499 = vmul.f32 %v494, 0.06666667
        %v500 = vrsqrt.pop %v499
        %v501 = vmul.f32 %v499, %v500
        %vm502 = vcmp.eq.f32.partialorder %v499, inf
        %v503 = vsel %vm502, %v499, %v501
        %vm504 = vcmp.eq.f32.partialorder %v499, 0.0
        %v505 = vand.u32 %v499, 2147483648
        %v506 = vsel %vm504, %v505, %v503
        %v507 = vadd.f32 %v506, 1e-05
        %v508 = vrcp.pop %v507
        %v509 = vpack.c.bf16 %v508, %v508
        %v510 = vunpack.c.l.bf16 %v509
        %v511 = vsub.f32 %v508, %v510
        %v512 = vpack.c.bf16 %v511, %v511
        %v514 = vsel %vm322, %v512, 0
        %516 = vmatprep.subr.bf16.mxu0 0
        %517 = vmatpush1.bf16.msra.mxu0 %v328
        %518 = vmatprep.subr.bf16.mxu0 0
        %519 = vmatpush1.bf16.msra.mxu0 0
        %520 = vmatprep.subr.bf16.mxu0 0
        %521 = vmatpush1.bf16.msra.mxu0 0
        %522 = vmatprep.subr.bf16.mxu0 0
        %523 = vmatpush1.bf16.msra.mxu0 0
        %524 = vmatprep.subr.bf16.mxu0 0
        %525 = vmatpush1.bf16.msra.mxu0 0
        %526 = vmatprep.subr.bf16.mxu0 0
        %527 = vmatpush1.bf16.msra.mxu0 0
        %528 = vmatprep.subr.bf16.mxu0 0
        %529 = vmatpush1.bf16.msra.mxu0 0
        %530 = vmatprep.subr.bf16.mxu0 0
        %531 = vmatpush1.bf16.msra.mxu0 0
        %532 = vmatprep.subr.bf16.mxu0 0
        %533 = vmatpush1.bf16.msra.mxu0 0
        %534 = vmatprep.subr.bf16.mxu0 0
        %535 = vmatpush1.bf16.msra.mxu0 0
        %536 = vmatprep.subr.bf16.mxu0 0
        %537 = vmatpush1.bf16.msra.mxu0 0
        %538 = vmatprep.subr.bf16.mxu0 0
        %539 = vmatpush1.bf16.msra.mxu0 0
        %540 = vmatprep.subr.bf16.mxu0 0
        %541 = vmatpush1.bf16.msra.mxu0 0
        %542 = vmatprep.subr.bf16.mxu0 0
        %543 = vmatpush1.bf16.msra.mxu0 0
        %544 = vmatprep.subr.bf16.mxu0 0
        %545 = vmatpush1.bf16.msra.mxu0 0
        %546 = vmatprep.subr.bf16.mxu0 0
        %547 = vmatpush1.bf16.msra.mxu0 0
        %548 = vmatprep.mubr.bf16.mxu0 0
        %549 = vmatmul.mubr.bf16.gmra.mrb[0].mxu0 %v514
        %v550 = vpop.f32.mrb[0].mxu0
        %v551 = vadd.f32 0.0, %v550
        %v552 = vpop.f32.mrb[0].mxu0
        %v553 = vpop.f32.mrb[0].mxu0
        %v554 = vpop.f32.mrb[0].mxu0
        %555 = vdwg.mxu0
        %v557 = vsel %vm322, %v509, 0
        %559 = vmatprep.subr.bf16.mxu0 0
        %560 = vmatpush1.bf16.msra.mxu0 %v328
        %561 = vmatprep.subr.bf16.mxu0 0
        %562 = vmatpush1.bf16.msra.mxu0 0
        %563 = vmatprep.subr.bf16.mxu0 0
        %564 = vmatpush1.bf16.msra.mxu0 0
        %565 = vmatprep.subr.bf16.mxu0 0
        %566 = vmatpush1.bf16.msra.mxu0 0
        %567 = vmatprep.subr.bf16.mxu0 0
        %568 = vmatpush1.bf16.msra.mxu0 0
        %569 = vmatprep.subr.bf16.mxu0 0
        %570 = vmatpush1.bf16.msra.mxu0 0
        %571 = vmatprep.subr.bf16.mxu0 0
        %572 = vmatpush1.bf16.msra.mxu0 0
        %573 = vmatprep.subr.bf16.mxu0 0
        %574 = vmatpush1.bf16.msra.mxu0 0
        %575 = vmatprep.subr.bf16.mxu0 0
        %576 = vmatpush1.bf16.msra.mxu0 0
        %577 = vmatprep.subr.bf16.mxu0 0
        %578 = vmatpush1.bf16.msra.mxu0 0
        %579 = vmatprep.subr.bf16.mxu0 0
        %580 = vmatpush1.bf16.msra.mxu0 0
        %581 = vmatprep.subr.bf16.mxu0 0
        %582 = vmatpush1.bf16.msra.mxu0 0
        %583 = vmatprep.subr.bf16.mxu0 0
        %584 = vmatpush1.bf16.msra.mxu0 0
        %585 = vmatprep.subr.bf16.mxu0 0
        %586 = vmatpush1.bf16.msra.mxu0 0
        %587 = vmatprep.subr.bf16.mxu0 0
        %588 = vmatpush1.bf16.msra.mxu0 0
        %589 = vmatprep.subr.bf16.mxu0 0
        %590 = vmatpush1.bf16.msra.mxu0 0
        %591 = vmatprep.mubr.bf16.mxu0 0
        %592 = vmatmul.mubr.bf16.gmra.mrb[0].mxu0 %v557
        %v593 = vpop.f32.mrb[0].mxu0
        %v594 = vadd.f32 %v551, %v593
        %v595 = vpop.f32.mrb[0].mxu0
        %v596 = vpop.f32.mrb[0].mxu0
        %v597 = vpop.f32.mrb[0].mxu0
        %598 = vdwg.mxu0
        %v599 = vmul.f32 %v413, %v594
        %600 = vst [vmem:[%s161] sm:$0xff] %v599
        %s601 = sand.u32 %s93, 1
        %s602 = scalar_lea.sflag [#allocation3], %s601
        %s603 = sand.u32 %s93, 1
        %s604 = smul.addr %s603, 8
        %s605 = scalar_lea.vmem [#allocation2], %s604
        // Predicated region
        $region33: #{tpu_custom_call.1} parent=31 // pred_check
          %p606 = pneg %p103
        $region34: #{tpu_custom_call.1} parent=31 // pred_check_branch
          %608 = sbr.rel (%p606) target = $region36
        $region35: #{tpu_custom_call.1} parent=31 // pred_region
          %s610 = ssub.s32 128, 128
          %611 = vsyncadd %s602, %s610
          %s612 = smul.addr %s17, 128
          %s613 = scalar_lea.hbm %s3, %s612
          %s615 = sshll.u32 %s605, 4
          %s616 = int_to_ptr.vmem [resolvable:$true] %s615
          %618 = dma.vmem_to_hbm [thread:$0]  %s616, 128, %s613, %s602
        $region36: #{tpu_custom_call.1} parent=31 // pred_fallthru
          _
      $region32: #{tpu_custom_call.1} parent=5 // pred_fallthru
        _
      %p619 = scmp.le.s32.totalorder 2, %s12
      // Predicated region
      $region37: #{tpu_custom_call.1} parent=5 // pred_check
        %p620 = pneg %p619
      $region38: #{tpu_custom_call.1} parent=5 // pred_check_branch
        %622 = sbr.rel (%p620) target = $region40
      $region39: #{tpu_custom_call.1} parent=5 // pred_region
        %s623 = ssub.s32 %s12, 2
        // Predicated region
        $region41: #{tpu_custom_call.1} parent=39 // pred_check
          %p624 = pneg %p109
        $region42: #{tpu_custom_call.1} parent=39 // pred_check_branch
          %626 = sbr.rel (%p624) target = $region44
        $region43: #{tpu_custom_call.1} parent=39 // pred_region
          %s627 = sand.u32 %s94, 1
          %s628 = scalar_lea.sflag [#allocation3], %s627
          %s629 = sand.u32 %s94, 1
          %s630 = smul.addr %s629, 8
          %s631 = scalar_lea.vmem [#allocation2], %s630
          %632 = dma.done %s628, 128
        $region44: #{tpu_custom_call.1} parent=39 // pred_fallthru
          _
      $region40: #{tpu_custom_call.1} parent=5 // pred_fallthru
        _
    $region6: #{tpu_custom_call.1} parent=1 // loop_footer
      %s16 = sadd.s32 1, %s12
    $region7: #{tpu_custom_call.1} parent=1 // loop_footer_branch
      %11 = sbr.rel target = $region3
    $region8: #{tpu_custom_call.1} parent=1 // loop_exit
      _
    %633 = vsyncpa [#allocation3], 1
    %s634 = scalar_lea.sflag [#allocation3], 1
    %635 = vsyncpa %s634, 1

</llo_original>
